<compile_context>
chip_gen: v6e
topology: v6e:2x2x1
jax: 0.10.0
libtpu: 0.0.40
codegen_flags: <defaults>
</compile_context>

<pallas_src>
import math
from functools import partial

import jax
import jax.numpy as jnp
from jax.experimental import pallas as pl
from jax.experimental.pallas import tpu as pltpu


def posenc_kernel(x_ref, pe_ref, o_ref, *, batch):
    # x_ref : (tile_s, B*D) -- lane-dense rows of x (seq on sublanes, B*D on lanes)
    # pe_ref: (tile_s, D)   -- matching rows of the sinusoid table
    # Replicate pe across the B contiguous D-chunks of each row, then a single
    # VPU add. The replication happens on the small pe block in VMEM only.
    # TODO(synk): training-mode dropout (nn.Dropout p=0.1) omitted; eval-mode
    # forward is the identity (could use pltpu.prng_seed + stateful_bernoulli).
    pe = pe_ref[...]
    if batch > 1:
        pe = jnp.tile(pe, (1, batch))
    o_ref[...] = (x_ref[...] + pe).astype(o_ref.dtype)


def make_positional_encoding_table(d_model, max_len=5000, dtype=jnp.float32):
    """Replicates the PyTorch buffer: pe of shape (max_len, 1, d_model)."""
    position = jnp.arange(max_len, dtype=jnp.float32)[:, None]              # (L, 1)
    div_term = jnp.exp(jnp.arange(0, d_model, 2, dtype=jnp.float32)
                       * (-math.log(10000.0) / d_model))                    # (ceil(D/2),)
    pe = jnp.zeros((max_len, d_model), dtype=jnp.float32)
    pe = pe.at[:, 0::2].set(jnp.sin(position * div_term))
    # cos half has floor(D/2) columns; slice div_term so odd d_model also works.
    pe = pe.at[:, 1::2].set(jnp.cos(position * div_term[: d_model // 2]))
    # Table is built in f32 then cast; if x is bf16 the in-kernel add promotes
    # to f32 and downcasts on store (>= PyTorch precision).
    return pe[:, None, :].astype(dtype)                                     # (L, 1, D)


def _round_up(v, m):
    return ((v + m - 1) // m) * m


def positional_encoding_pallas(x, pe, *, tile_s=None, vmem_budget_bytes=12 << 20):
    """x: [S, B, D]; pe: [max_len, 1, D] (or [max_len, D]). Returns x + pe[:S]."""
    S, B, D = x.shape
    L = pe.shape[0]
    if S > L:
        raise ValueError(f"sequence length {S} exceeds positional table length {L}")

    # Free, contiguous relabels (no data movement, no slicing of pe):
    pe2d = pe.reshape(L, D)          # (L, D)
    x2d = x.reshape(S, B * D)        # lane-dense trailing plane

    itemsize = x.dtype.itemsize
    row_bytes = B * D * itemsize               # one seq row of x (== one out row)
    pe_row_bytes = D * pe.dtype.itemsize

    if tile_s is None:
        # Budget the FULL pipelined VMEM footprint: double-buffered x, out and
        # pe blocks. ~12 MiB total sits comfortably under the default scoped
        # VMEM limit on v5e (16 MiB), v6e (32 MiB) and v7x (32 MiB of 64 MiB),
        # while blocks stay well past the ~1 MiB / 85%-of-roofline plateau.
        per_row = 2 * (2 * row_bytes + pe_row_bytes)
        tile_s = max(8, (vmem_budget_bytes // max(per_row, 1)) // 8 * 8)
    tile_s = max(8, _round_up(tile_s, 8))          # sublane-aligned tiles
    tile_s = min(tile_s, _round_up(S, 8))          # never bigger than needed

    grid = (pl.cdiv(S, tile_s),)                   # many steps at large S -> both
                                                   # TCs stream on v7x ("parallel")

    cost = pl.CostEstimate(
        flops=S * B * D,
        bytes_accessed=2 * S * B * D * itemsize + S * D * pe.dtype.itemsize,
        transcendentals=0,
    )

    out2d = pl.pallas_call(
        partial(posenc_kernel, batch=B),
        out_shape=jax.ShapeDtypeStruct((S, B * D), x.dtype),
        grid_spec=pltpu.PrefetchScalarGridSpec(
            num_scalar_prefetch=0,
            grid=grid,
            in_specs=[
                pl.BlockSpec((tile_s, B * D), lambda i: (i, 0)),
                pl.BlockSpec((tile_s, D), lambda i: (i, 0)),   # full pe, no wrapper slice
            ],
            out_specs=pl.BlockSpec((tile_s, B * D), lambda i: (i, 0)),
        ),
        compiler_params=pltpu.CompilerParams(
            dimension_semantics=("parallel",),
            vmem_limit_bytes=32 << 20,
        ),
        cost_estimate=cost,
    )(x2d, pe2d)

    return out2d.reshape(S, B, D)


def positional_encoding(x, pe, *, min_pallas_bytes=1 << 20):
    """Dispatcher: for tiny tensors a standalone custom call is pure launch
    overhead and blocks XLA fusion, so fall back to the plain fused add."""
    if x.size * x.dtype.itemsize < min_pallas_bytes:
        return x + pe[: x.shape[0]]
    return positional_encoding_pallas(x, pe)


def positional_encoding_ref(x, pe):
    """Plain-JAX reference mirroring the PyTorch forward (eval mode)."""
    return x + pe[: x.shape[0]]


if __name__ == "__main__":
    S, B, D = 8, 2, 32          # (seq, batch, d_model) -- transformer layout
    MAX_LEN = 64

    key = jax.random.PRNGKey(0)
    x = jax.random.normal(key, (S, B, D), dtype=jnp.float32)
    pe = make_positional_encoding_table(D, max_len=MAX_LEN)

    out = positional_encoding_pallas(x, pe)      # exercise the Pallas kernel directly
    out = jax.block_until_ready(out)

    ref = positional_encoding_ref(x, pe)
    assert out.shape == (S, B, D)
    assert jnp.allclose(out, ref, atol=1e-6, rtol=1e-6), "mismatch vs reference"

    print("KERNEL_OK")
</pallas_src>

<mosaic_0001>
module attributes {stable_mosaic.version = 11 : i64} {
  func.func @posenc_kernel(%arg0: i32, %arg1: memref<8x64xf32, #tpu.memory_space<vmem>>, %arg2: memref<8x32xf32, #tpu.memory_space<vmem>>, %arg3: memref<8x64xf32, #tpu.memory_space<vmem>>) attributes {dimension_semantics = [#tpu.dimension_semantics<parallel>], iteration_bounds = array<i64: 1>, scalar_prefetch = 0 : i64, scratch_operands = 0 : i64, tpu.core_type = #tpu.core_type<tc>, window_params = [{transform_indices = @transform_0, window_bounds = array<i64: 8, 64>}, {transform_indices = @transform_1, window_bounds = array<i64: 8, 32>}, {transform_indices = @transform_2, window_bounds = array<i64: 8, 64>}]} {
    %c0 = arith.constant 0 : index
    %c0_0 = arith.constant 0 : index
    %0 = vector.load %arg2[%c0, %c0_0] : memref<8x32xf32, #tpu.memory_space<vmem>>, vector<8x32xf32>
    %1 = tpu.concatenate %0, %0 in 1 : vector<8x32xf32>, vector<8x32xf32> -> vector<8x64xf32>
    %c0_1 = arith.constant 0 : index
    %c0_2 = arith.constant 0 : index
    %2 = vector.load %arg1[%c0_1, %c0_2] : memref<8x64xf32, #tpu.memory_space<vmem>>, vector<8x64xf32>
    %3 = arith.addf %2, %1 : vector<8x64xf32>
    %c0_3 = arith.constant 0 : index
    %c0_4 = arith.constant 0 : index
    %4 = vector.load %arg3[%c0_3, %c0_4] : memref<8x64xf32, #tpu.memory_space<vmem>>, vector<8x64xf32>
    tpu.vector_store %arg3[%c0_3, %c0_4], %3 {strides = array<i32>} : memref<8x64xf32, #tpu.memory_space<vmem>>, vector<8x64xf32>,
    return
  }
  func.func @transform_0(%arg0: i32) -> (i32, i32) {
    %c0_i32 = arith.constant 0 : i32
    %c0_i32_0 = arith.constant 0 : i32
    return %arg0, %c0_i32 : i32, i32
  }
  func.func @transform_1(%arg0: i32) -> (i32, i32) {
    %c0_i32 = arith.constant 0 : i32
    %c0_i32_0 = arith.constant 0 : i32
    return %arg0, %c0_i32 : i32, i32
  }
  func.func @transform_2(%arg0: i32) -> (i32, i32) {
    %c0_i32 = arith.constant 0 : i32
    %c0_i32_0 = arith.constant 0 : i32
    return %arg0, %c0_i32 : i32, i32
  }
}

</mosaic_0001>

<llo_original>
// kernel: tpu_custom_call.1
$region0: #{tpu_custom_call.1}
  #allocation0 [shape = 'u32[]', space=smem, size = 0x4, offset = 0x4, fixed_abs, tag = 'smem constant byte address 0x4 - core index']
  #allocation1 [shape = 'u32[144,128]{1,0:T(1,128)}', space=vmem, size = 0x12000, scoped, tag = 'internal scratch']
  %s0 = inlined_call_operand.vmem [shape: f32[8,64], index: 0, kind: input, shape index: {}]
  %s1 = inlined_call_operand.vmem [shape: f32[64,32], index: 1, kind: input, shape index: {}]
  %s2 = inlined_call_operand.hbm [shape: f32[8,64], index: 2, kind: output, shape index: {}]
  %s3 = sld [smem:[#allocation0]]
  $region18: #{tpu_custom_call.1} parent=0
    _
  %s5 = ssub.s32 1, %s3
  %s6 = scalar_select 0, %s5, %s3
  $region1: #{tpu_custom_call.1} parent=0
    #allocation2 [shape = 'u8[4096]{0}', space=vmem, size = 0x1000, scoped, tag = 'output window, operand 0, single buffered']
    #allocation3 [shape = 's32[1]{0}', space=sflag, size = 0x4, scoped, tag = 'scoped memory for tpu_custom_call.1']
    %7 = vsyncpa [#allocation3], 0
    // Predicated region
    $region2: #{tpu_custom_call.1} parent=1 // pred_check
      _
    $region3: #{tpu_custom_call.1} parent=1 // pred_check_branch
      %9 = sbr.rel (0) target = $region5
    $region4: #{tpu_custom_call.1} parent=1 // pred_region
      _
    $region5: #{tpu_custom_call.1} parent=1 // pred_fallthru
      _
    // Predicated region
    $region6: #{tpu_custom_call.1} parent=1 // pred_check
      _
    $region7: #{tpu_custom_call.1} parent=1 // pred_check_branch
      %11 = sbr.rel (0) target = $region9
    $region8: #{tpu_custom_call.1} parent=1 // pred_region
      _
    $region9: #{tpu_custom_call.1} parent=1 // pred_fallthru
      _
    %v12 = vld [vmem:[%s1] sm:$0xff]
    %14 = vrot.lane.b32.xlu0 %v12, 32
    %v15 = vpop.permute.xlu0 %14
    %vm17 = vcmask 261120
    %v18 = vsel %vm17, %v12, %v15
    %v19 = vld [vmem:[%s0] sm:$0xff]
    %v20 = vadd.f32 %v19, %v18
    %vm21 = vcmask 523264
    %22 = vst.msk [vmem:[#allocation2] sm:$0xff] %vm21, %v20
    // Predicated region
    $region10: #{tpu_custom_call.1} parent=1 // pred_check
      _
    $region11: #{tpu_custom_call.1} parent=1 // pred_check_branch
      %24 = sbr.rel (0) target = $region13
    $region12: #{tpu_custom_call.1} parent=1 // pred_region
      %s26 = ssub.s32 128, 128
      %27 = vsyncadd [#allocation3], %s26
      %s29 = sshll.u32 [#allocation2], 4
      %s30 = int_to_ptr.vmem [resolvable:$true] %s29
      %32 = dma.vmem_to_hbm [thread:$0]  %s30, 128, %s2, [#allocation3]
    $region13: #{tpu_custom_call.1} parent=1 // pred_fallthru
      _
    // Predicated region
    $region14: #{tpu_custom_call.1} parent=1 // pred_check
      _
    $region15: #{tpu_custom_call.1} parent=1 // pred_check_branch
      %34 = sbr.rel (0) target = $region17
    $region16: #{tpu_custom_call.1} parent=1 // pred_region
      %35 = dma.done [#allocation3], 128
    $region17: #{tpu_custom_call.1} parent=1 // pred_fallthru
      _
    %36 = vsyncpa [#allocation3], 1

</llo_original>
